<compile_context>
chip_gen: v5e
topology: v5e:2x2
jax: 0.10.0
libtpu: 0.0.40
codegen_flags: <defaults>
</compile_context>

<pallas_src>
import functools

import jax
import jax.numpy as jnp
from jax import lax
from jax.experimental import pallas as pl
from jax.experimental.pallas import tpu as pltpu


def _convrelu_kernel(h, w, nb, tap_dtype, use_im2col,
                     x_ref, w_ref, b_ref, a_ref, o_ref, *scratch):
    # x_ref:       (Nb, Cin, H*W)    input block (VMEM), compute dtype
    # w_ref:       (Cout, 9*Cin)     weights, k = (kh*3 + kw)*Cin + ci (VMEM)
    # b_ref:       (Cout, 1)         bias, f32 (VMEM)
    # a_ref:       (1, 1)            PReLU slope, f32 (SMEM scalar)
    # o_ref:       (Nb, Cout, H*W)   output block (lane-dense, NCHW-flattened)
    # scratch[0]:  (9*Cin, Nb*H*W)   im2col scratch (VMEM), only if use_im2col
    hw = h * w
    cin = x_ref.shape[1]
    compute_dt = w_ref.dtype
    patches_ref = scratch[0] if use_im2col else None

    # Boundary masks: computed once on a (1, HW) row, sublane-broadcast in the
    # selects below (cuts the integer iota/mod/compare work by Nb*Cin x).
    lane = lax.broadcasted_iota(jnp.int32, (1, hw), 1)
    col = lane % w
    is_c0 = col == 0            # x == 0
    is_cl = col == w - 1        # x == W-1
    is_r0 = lane < w            # y == 0
    is_rl = lane >= hw - w      # y == H-1

    def shl(v, k):
        # Circular left shift along the flattened lane axis:
        #   shl(v, k)[..., i] == v[..., (i + k) % hw]
        # pltpu.roll follows jnp.roll semantics (out[i] = in[(i - s) % n]).
        s = (-k) % hw
        if s == 0:
            return v
        return pltpu.roll(v, s, axis=1)

    alpha = a_ref[0, 0]
    bias = b_ref[...]                        # (Cout, 1) f32

    for b in range(nb):                      # static Python loop over folded images
        xb = x_ref[b].astype(tap_dtype)      # (Cin, HW); tap build dtype
                                             # (f32 for v5e VPU, bf16 on v6e/v7x)

        # Horizontal neighbours with reflection at x==0 / x==W-1.  Circular-wrap
        # artifacts from the rolls are always overwritten by the selects.
        x_next = shl(xb, 1)
        x_prev = shl(xb, -1)
        h_taps = (jnp.where(is_c0, x_next, x_prev),   # kw=0: img[y, reflect(x-1)]
                  xb,                                 # kw=1: img[y, x]
                  jnp.where(is_cl, x_prev, x_next))   # kw=2: img[y, reflect(x+1)]

        acc_b = None
        for kw_i, hv in enumerate(h_taps):
            # Vertical neighbours (whole-row shifts of +/-W) with reflection.
            nxt = shl(hv, w)     # row y+1 (circular)
            prv = shl(hv, -w)    # row y-1 (circular)
            v_taps = (jnp.where(is_r0, nxt, prv),     # kh=0: row reflect(y-1)
                      hv,                             # kh=1: row y
                      jnp.where(is_rl, prv, nxt))     # kh=2: row reflect(y+1)
            for kh_i, tv in enumerate(v_taps):
                t = kh_i * 3 + kw_i                   # matches weight flattening
                tv = tv.astype(compute_dt)
                if use_im2col:
                    patches_ref[t * cin:(t + 1) * cin, b * hw:(b + 1) * hw] = tv
                else:
                    part = jnp.dot(w_ref[:, t * cin:(t + 1) * cin], tv,
                                   preferred_element_type=jnp.float32)
                    acc_b = part if acc_b is None else acc_b + part

        if not use_im2col:
            acc_b = acc_b + bias
            acc_b = jnp.where(acc_b > 0, acc_b, alpha * acc_b)
            o_ref[b] = acc_b.astype(o_ref.dtype)

    if use_im2col:
        # Single MXU contraction over K = 9*Cin and Nb*HW lanes, f32 acc.
        acc = jnp.dot(w_ref[...], patches_ref[...],
                      preferred_element_type=jnp.float32)    # (Cout, Nb*HW)
        acc = acc + bias
        acc = jnp.where(acc > 0, acc, alpha * acc)
        acc = acc.astype(o_ref.dtype)
        for b in range(nb):
            o_ref[b] = acc[:, b * hw:(b + 1) * hw]           # 128-aligned lane slice


def conv_relu(x_nchw, weight, bias, prelu_alpha, *,
              compute_dtype=None, tap_dtype=None, out_dtype=None,
              images_per_step=None, im2col=None):
    """ConvRelu forward: ReflectionPad2d(1) + Conv2d(Cin,Cout,3,stride=1) + PReLU.

    x_nchw:          (N, Cin, H, W)
    weight:          (Cout, Cin, 3, 3)  (PyTorch Conv2d layout)
    bias:            (Cout,)
    prelu_alpha:     scalar (shared slope, nn.PReLU() default)
    compute_dtype:   MXU operand dtype (e.g. jnp.bfloat16 — fine on v5e/v6e/v7x;
                     accumulation + bias/PReLU epilogue are always f32)
    tap_dtype:       dtype for the in-kernel halo/tap build; default = compute
                     dtype.  Pass jnp.float32 on v5e (no bf16 VPU).
    out_dtype:       output dtype (e.g. jnp.bfloat16 to halve HBM writeback);
                     default = x dtype.
    images_per_step: images folded into one grid step (must divide N); default
                     picks the largest that fits a VMEM budget while keeping
                     >= 2 parallel grid steps (v7x megacore).
    im2col:          True -> one K=9*Cin matmul through a VMEM scratch;
                     False -> 9 accumulating dots (no scratch).  Default: Cin<32.
    returns:         (N, Cout, H, W) in out_dtype
    """
    n, cin, h, w = x_nchw.shape
    cout = weight.shape[0]
    hw = h * w
    if h < 2 or w < 2:
        raise ValueError("ReflectionPad2d(1) requires H >= 2 and W >= 2.")

    compute_dt = jnp.dtype(compute_dtype) if compute_dtype is not None else jnp.dtype(x_nchw.dtype)
    tap_dt = jnp.dtype(tap_dtype) if tap_dtype is not None else compute_dt
    out_dt = jnp.dtype(out_dtype) if out_dtype is not None else jnp.dtype(x_nchw.dtype)

    if im2col is None:
        # im2col duplicates the input 9x through VMEM (scratch + vst traffic);
        # for large Cin switch to accumulating dots instead.
        im2col = cin < 32

    # Per-image VMEM footprint of one grid step (double-buffered I/O + scratch
    # or f32 accumulator), used to budget the batch folding.
    per_image = (2 * cin * hw * compute_dt.itemsize
                 + 2 * cout * hw * out_dt.itemsize
                 + (9 * cin * hw * compute_dt.itemsize if im2col
                    else cout * hw * 4))

    if images_per_step is None:
        budget = 8 * 1024 * 1024          # conservative: fits v7x's 64 MiB VMEM easily
        nb = max(1, min(n, budget // max(per_image, 1)))
        if n >= 2:
            nb = min(nb, n // 2)          # keep >= 2 "parallel" grid steps for v7x
        if hw % 128 != 0:
            nb = 1                        # avoid non-128-aligned lane slices
        while n % nb:                     # exact blocking
            nb -= 1
    else:
        nb = int(images_per_step)
        if nb < 1 or n % nb:
            raise ValueError("images_per_step must divide the batch size")
    steps = n // nb

    # Free, contiguous reshapes only (no HBM transpose / pad passes).
    x_flat = x_nchw.reshape(n, cin, hw).astype(compute_dt)
    # (Cout, Cin, 3, 3) -> (Cout, 3, 3, Cin) -> (Cout, 9*Cin); k = (kh*3+kw)*Cin + ci.
    w2 = jnp.transpose(weight, (0, 2, 3, 1)).reshape(cout, 9 * cin).astype(compute_dt)
    b2 = bias.astype(jnp.float32).reshape(cout, 1)
    alpha = jnp.asarray(prelu_alpha, jnp.float32).reshape(1, 1)

    kernel = functools.partial(_convrelu_kernel, h, w, nb, tap_dt, im2col)

    scratch_shapes = [pltpu.VMEM((9 * cin, nb * hw), compute_dt)] if im2col else []

    weights_bytes = cout * 9 * cin * compute_dt.itemsize + cout * 4
    vmem_limit = int(min(64 * 1024 * 1024,
                         max(32 * 1024 * 1024, 2 * (nb * per_image + weights_bytes))))

    out_flat = pl.pallas_call(
        kernel,
        out_shape=jax.ShapeDtypeStruct((n, cout, hw), out_dt),
        grid_spec=pltpu.PrefetchScalarGridSpec(
            num_scalar_prefetch=0,
            grid=(steps,),
            in_specs=[
                pl.BlockSpec((nb, cin, hw), lambda i: (i, 0, 0)),
                # Grid-invariant operands (weights / bias) stay VMEM-resident.
                pl.BlockSpec((cout, 9 * cin), lambda i: (0, 0)),
                pl.BlockSpec((cout, 1), lambda i: (0, 0)),
                pl.BlockSpec(memory_space=pltpu.MemorySpace.SMEM),
            ],
            out_specs=pl.BlockSpec((nb, cout, hw), lambda i: (i, 0, 0)),
            scratch_shapes=scratch_shapes,
        ),
        compiler_params=pltpu.CompilerParams(
            dimension_semantics=("parallel",),
            vmem_limit_bytes=vmem_limit,
        ),
    )(x_flat, w2, b2, alpha)

    # (N, Cout, H*W) is already NCHW-flattened; this reshape is free.
    return out_flat.reshape(n, cout, h, w)


def _reference(x_nchw, weight, bias, prelu_alpha):
    """Pure-JAX reference (reflection pad + conv + PReLU) for validation."""
    x_nhwc = jnp.transpose(x_nchw, (0, 2, 3, 1))
    x_pad = jnp.pad(x_nhwc, ((0, 0), (1, 1), (1, 1), (0, 0)), mode="reflect")
    w_hwio = jnp.transpose(weight, (2, 3, 1, 0))  # HWIO
    y = lax.conv_general_dilated(
        x_pad, w_hwio, window_strides=(1, 1), padding="VALID",
        dimension_numbers=("NHWC", "HWIO", "NHWC"),
    ) + bias[None, None, None, :]
    y = jnp.where(y > 0, y, prelu_alpha * y)
    return jnp.transpose(y, (0, 3, 1, 2))


if __name__ == "__main__":
    key = jax.random.PRNGKey(0)

    def make_params(k, cin, cout):
        kw_, kb = jax.random.split(k)
        bound = 1.0 / ((cin * 9) ** 0.5)
        weight = jax.random.uniform(kw_, (cout, cin, 3, 3), jnp.float32, -bound, bound)
        bias = jax.random.uniform(kb, (cout,), jnp.float32, -bound, bound)
        return weight, bias

    prelu_alpha = jnp.float32(0.25)  # nn.PReLU() default init

    # --- Test 1: f32, default tiling (N=2 -> Nb=1 -> 2 parallel grid steps) ---
    k1, k2, key = jax.random.split(key, 3)
    N, Cin, Cout, H, W = 2, 4, 8, 16, 16
    x = jax.random.normal(k1, (N, Cin, H, W), jnp.float32)
    weight, bias = make_params(k2, Cin, Cout)
    out = jax.block_until_ready(conv_relu(x, weight, bias, prelu_alpha))
    ref = _reference(x, weight, bias, prelu_alpha)
    assert out.shape == (N, Cout, H, W) and out.dtype == jnp.float32
    assert jnp.allclose(out, ref, atol=2e-3, rtol=2e-3), "f32 mismatch vs reference"

    # --- Test 2: batch folded into one step, bf16 taps + bf16 MXU + bf16 output ---
    out_bf = jax.block_until_ready(conv_relu(
        x, weight, bias, prelu_alpha, compute_dtype=jnp.bfloat16,
        out_dtype=jnp.bfloat16, images_per_step=2))
    ref_bf = _reference(x.astype(jnp.bfloat16).astype(jnp.float32),
                        weight.astype(jnp.bfloat16).astype(jnp.float32),
                        bias, prelu_alpha)
    assert out_bf.dtype == jnp.bfloat16
    assert jnp.allclose(out_bf.astype(jnp.float32), ref_bf, atol=4e-2, rtol=4e-2), \
        "bf16 mismatch vs reference"

    # --- Test 3: larger batch, accumulate-dots path (no im2col scratch),
    #             v5e-safe f32 tap build with bf16 MXU operands, 2 grid steps ---
    k3, k4, key = jax.random.split(key, 3)
    N3, Cin3, Cout3 = 4, 8, 16
    x3 = jax.random.normal(k3, (N3, Cin3, H, W), jnp.float32)
    w3, b3 = make_params(k4, Cin3, Cout3)
    out3 = jax.block_until_ready(conv_relu(
        x3, w3, b3, prelu_alpha, compute_dtype=jnp.bfloat16,
        tap_dtype=jnp.float32, images_per_step=2, im2col=False))
    ref3 = _reference(x3.astype(jnp.bfloat16).astype(jnp.float32),
                      w3.astype(jnp.bfloat16).astype(jnp.float32),
                      b3, prelu_alpha)
    assert out3.shape == (N3, Cout3, H, W)
    assert jnp.allclose(out3, ref3, atol=4e-2, rtol=4e-2), "accum-dots mismatch vs reference"

    print("KERNEL_OK")
</pallas_src>

<mosaic_0001>
module attributes {stable_mosaic.version = 11 : i64} {
  func.func @_convrelu_kernel(%arg0: i32, %arg1: memref<1x4x256xf32, #tpu.memory_space<vmem>>, %arg2: memref<8x36xf32, #tpu.memory_space<vmem>>, %arg3: memref<8x1xf32, #tpu.memory_space<vmem>>, %arg4: memref<1x1xf32, #tpu.memory_space<smem>>, %arg5: memref<1x8x256xf32, #tpu.memory_space<vmem>>, %arg6: memref<36x256xf32, #tpu.memory_space<vmem>>) attributes {dimension_semantics = [#tpu.dimension_semantics<parallel>], iteration_bounds = array<i64: 2>, scalar_prefetch = 0 : i64, scratch_operands = 1 : i64, tpu.core_type = #tpu.core_type<tc>, window_params = [{transform_indices = @transform_0, window_bounds = array<i64: 1, 4, 256>}, {pipeline_mode = #tpu.pipeline_mode<synchronous>, transform_indices = @transform_1, window_bounds = array<i64: 8, 36>}, {pipeline_mode = #tpu.pipeline_mode<synchronous>, transform_indices = @transform_2, window_bounds = array<i64: 8, 1>}, {transform_indices = @transform_3, window_bounds = array<i64: 1, 1>}, {transform_indices = @transform_4, window_bounds = array<i64: 1, 8, 256>}]} {
    %0 = tpu.iota {dimensions = array<i32: 1>} : vector<1x256xi32>
    %c16_i32 = arith.constant 16 : i32
    %c0_i32 = arith.constant 0 : i32
    %1 = arith.cmpi eq, %c16_i32, %c0_i32 : i32
    %c1_i32 = arith.constant 1 : i32
    %2 = arith.select %1, %c1_i32, %c16_i32 : i32
    %3 = vector.broadcast %2 : i32 to vector<1x256xi32>
    %4 = arith.remsi %0, %3 : vector<1x256xi32>
    %c0_i32_0 = arith.constant 0 : i32
    %5 = vector.broadcast %c0_i32_0 : i32 to vector<1x256xi32>
    %6 = arith.cmpi ne, %4, %5 : vector<1x256xi32>
    %c0_i32_1 = arith.constant 0 : i32
    %7 = vector.broadcast %c0_i32_1 : i32 to vector<1x256xi32>
    %8 = arith.cmpi slt, %4, %7 : vector<1x256xi32>
    %c0_i32_2 = arith.constant 0 : i32
    %9 = arith.cmpi slt, %2, %c0_i32_2 : i32
    %10 = vector.broadcast %9 : i1 to vector<1x256xi1>
    %11 = vector.broadcast %10 : vector<1x256xi1> to vector<1x256xi1>
    %12 = arith.xori %8, %11 : vector<1x256xi1>
    %13 = arith.andi %12, %6 : vector<1x256xi1>
    %14 = vector.broadcast %2 : i32 to vector<1x256xi32>
    %15 = arith.addi %4, %14 : vector<1x256xi32>
    %16 = arith.select %13, %15, %4 : vector<1x256xi1>, vector<1x256xi32>
    %c0_i32_3 = arith.constant 0 : i32
    %17 = vector.broadcast %c0_i32_3 : i32 to vector<1x256xi32>
    %18 = arith.cmpi eq, %16, %17 : vector<1x256xi32>
    %c15_i32 = arith.constant 15 : i32
    %19 = vector.broadcast %c15_i32 : i32 to vector<1x256xi32>
    %20 = arith.cmpi eq, %16, %19 : vector<1x256xi32>
    %c16_i32_4 = arith.constant 16 : i32
    %21 = vector.broadcast %c16_i32_4 : i32 to vector<1x256xi32>
    %22 = arith.cmpi slt, %0, %21 : vector<1x256xi32>
    %c240_i32 = arith.constant 240 : i32
    %23 = vector.broadcast %c240_i32 : i32 to vector<1x256xi32>
    %24 = arith.cmpi sge, %0, %23 : vector<1x256xi32>
    %c0 = arith.constant 0 : index
    %c0_5 = arith.constant 0 : index
    %25 = memref.load %arg4[%c0, %c0_5] : memref<1x1xf32, #tpu.memory_space<smem>>
    %c0_6 = arith.constant 0 : index
    %c0_7 = arith.constant 0 : index
    %26 = vector.load %arg3[%c0_6, %c0_7] : memref<8x1xf32, #tpu.memory_space<vmem>>, vector<8x1xf32>
    %c0_8 = arith.constant 0 : index
    %c0_9 = arith.constant 0 : index
    %c0_10 = arith.constant 0 : index
    %27 = vector.load %arg1[%c0_8, %c0_9, %c0_10] : memref<1x4x256xf32, #tpu.memory_space<vmem>>, vector<1x4x256xf32>
    %28 = vector.shape_cast %27 : vector<1x4x256xf32> to vector<4x256xf32>
    %c255_i32 = arith.constant 255 : i32
    %29 = tpu.dynamic_rotate %28 by %c255_i32 dim 1 : vector<4x256xf32>, i32 -> vector<4x256xf32>
    %c1_i32_11 = arith.constant 1 : i32
    %30 = tpu.dynamic_rotate %28 by %c1_i32_11 dim 1 : vector<4x256xf32>, i32 -> vector<4x256xf32>
    %31 = vector.shape_cast %18 : vector<1x256xi1> to vector<1x256xi1>
    %32 = vector.broadcast %31 : vector<1x256xi1> to vector<4x256xi1>
    %33 = arith.select %32, %29, %30 : vector<4x256xi1>, vector<4x256xf32>
    %34 = vector.shape_cast %20 : vector<1x256xi1> to vector<1x256xi1>
    %35 = vector.broadcast %34 : vector<1x256xi1> to vector<4x256xi1>
    %36 = arith.select %35, %30, %29 : vector<4x256xi1>, vector<4x256xf32>
    %c240_i32_12 = arith.constant 240 : i32
    %37 = tpu.dynamic_rotate %33 by %c240_i32_12 dim 1 : vector<4x256xf32>, i32 -> vector<4x256xf32>
    %c16_i32_13 = arith.constant 16 : i32
    %38 = tpu.dynamic_rotate %33 by %c16_i32_13 dim 1 : vector<4x256xf32>, i32 -> vector<4x256xf32>
    %39 = vector.shape_cast %22 : vector<1x256xi1> to vector<1x256xi1>
    %40 = vector.broadcast %39 : vector<1x256xi1> to vector<4x256xi1>
    %41 = arith.select %40, %37, %38 : vector<4x256xi1>, vector<4x256xf32>
    %42 = vector.shape_cast %24 : vector<1x256xi1> to vector<1x256xi1>
    %43 = vector.broadcast %42 : vector<1x256xi1> to vector<4x256xi1>
    %44 = arith.select %43, %38, %37 : vector<4x256xi1>, vector<4x256xf32>
    %c0_14 = arith.constant 0 : index
    %c0_15 = arith.constant 0 : index
    %45 = vector.load %arg6[%c0_14, %c0_15] : memref<36x256xf32, #tpu.memory_space<vmem>>, vector<4x256xf32>
    tpu.vector_store %arg6[%c0_14, %c0_15], %41 {strides = array<i32>} : memref<36x256xf32, #tpu.memory_space<vmem>>, vector<4x256xf32>,
    %c12 = arith.constant 12 : index
    %c0_16 = arith.constant 0 : index
    %46 = vector.load %arg6[%c12, %c0_16] : memref<36x256xf32, #tpu.memory_space<vmem>>, vector<4x256xf32>
    tpu.vector_store %arg6[%c12, %c0_16], %33 {strides = array<i32>} : memref<36x256xf32, #tpu.memory_space<vmem>>, vector<4x256xf32>,
    %c24 = arith.constant 24 : index
    %c0_17 = arith.constant 0 : index
    %47 = vector.load %arg6[%c24, %c0_17] : memref<36x256xf32, #tpu.memory_space<vmem>>, vector<4x256xf32>
    tpu.vector_store %arg6[%c24, %c0_17], %44 {strides = array<i32>} : memref<36x256xf32, #tpu.memory_space<vmem>>, vector<4x256xf32>,
    %c240_i32_18 = arith.constant 240 : i32
    %48 = tpu.dynamic_rotate %28 by %c240_i32_18 dim 1 : vector<4x256xf32>, i32 -> vector<4x256xf32>
    %c16_i32_19 = arith.constant 16 : i32
    %49 = tpu.dynamic_rotate %28 by %c16_i32_19 dim 1 : vector<4x256xf32>, i32 -> vector<4x256xf32>
    %50 = vector.shape_cast %22 : vector<1x256xi1> to vector<1x256xi1>
    %51 = vector.broadcast %50 : vector<1x256xi1> to vector<4x256xi1>
    %52 = arith.select %51, %48, %49 : vector<4x256xi1>, vector<4x256xf32>
    %53 = vector.shape_cast %24 : vector<1x256xi1> to vector<1x256xi1>
    %54 = vector.broadcast %53 : vector<1x256xi1> to vector<4x256xi1>
    %55 = arith.select %54, %49, %48 : vector<4x256xi1>, vector<4x256xf32>
    %c4 = arith.constant 4 : index
    %c0_20 = arith.constant 0 : index
    %56 = vector.load %arg6[%c4, %c0_20] : memref<36x256xf32, #tpu.memory_space<vmem>>, vector<4x256xf32>
    tpu.vector_store %arg6[%c4, %c0_20], %52 {strides = array<i32>} : memref<36x256xf32, #tpu.memory_space<vmem>>, vector<4x256xf32>,
    %c16 = arith.constant 16 : index
    %c0_21 = arith.constant 0 : index
    %57 = vector.load %arg6[%c16, %c0_21] : memref<36x256xf32, #tpu.memory_space<vmem>>, vector<4x256xf32>
    tpu.vector_store %arg6[%c16, %c0_21], %28 {strides = array<i32>} : memref<36x256xf32, #tpu.memory_space<vmem>>, vector<4x256xf32>,
    %c28 = arith.constant 28 : index
    %c0_22 = arith.constant 0 : index
    %58 = vector.load %arg6[%c28, %c0_22] : memref<36x256xf32, #tpu.memory_space<vmem>>, vector<4x256xf32>
    tpu.vector_store %arg6[%c28, %c0_22], %55 {strides = array<i32>} : memref<36x256xf32, #tpu.memory_space<vmem>>, vector<4x256xf32>,
    %c240_i32_23 = arith.constant 240 : i32
    %59 = tpu.dynamic_rotate %36 by %c240_i32_23 dim 1 : vector<4x256xf32>, i32 -> vector<4x256xf32>
    %c16_i32_24 = arith.constant 16 : i32
    %60 = tpu.dynamic_rotate %36 by %c16_i32_24 dim 1 : vector<4x256xf32>, i32 -> vector<4x256xf32>
    %61 = vector.shape_cast %22 : vector<1x256xi1> to vector<1x256xi1>
    %62 = vector.broadcast %61 : vector<1x256xi1> to vector<4x256xi1>
    %63 = arith.select %62, %59, %60 : vector<4x256xi1>, vector<4x256xf32>
    %64 = vector.shape_cast %24 : vector<1x256xi1> to vector<1x256xi1>
    %65 = vector.broadcast %64 : vector<1x256xi1> to vector<4x256xi1>
    %66 = arith.select %65, %60, %59 : vector<4x256xi1>, vector<4x256xf32>
    %c8 = arith.constant 8 : index
    %c0_25 = arith.constant 0 : index
    %67 = vector.load %arg6[%c8, %c0_25] : memref<36x256xf32, #tpu.memory_space<vmem>>, vector<4x256xf32>
    tpu.vector_store %arg6[%c8, %c0_25], %63 {strides = array<i32>} : memref<36x256xf32, #tpu.memory_space<vmem>>, vector<4x256xf32>,
    %c20 = arith.constant 20 : index
    %c0_26 = arith.constant 0 : index
    %68 = vector.load %arg6[%c20, %c0_26] : memref<36x256xf32, #tpu.memory_space<vmem>>, vector<4x256xf32>
    tpu.vector_store %arg6[%c20, %c0_26], %36 {strides = array<i32>} : memref<36x256xf32, #tpu.memory_space<vmem>>, vector<4x256xf32>,
    %c32 = arith.constant 32 : index
    %c0_27 = arith.constant 0 : index
    %69 = vector.load %arg6[%c32, %c0_27] : memref<36x256xf32, #tpu.memory_space<vmem>>, vector<4x256xf32>
    tpu.vector_store %arg6[%c32, %c0_27], %66 {strides = array<i32>} : memref<36x256xf32, #tpu.memory_space<vmem>>, vector<4x256xf32>,
    %c0_28 = arith.constant 0 : index
    %c0_29 = arith.constant 0 : index
    %70 = vector.load %arg2[%c0_28, %c0_29] : memref<8x36xf32, #tpu.memory_space<vmem>>, vector<8x36xf32>
    %c0_30 = arith.constant 0 : index
    %c0_31 = arith.constant 0 : index
    %71 = vector.load %arg6[%c0_30, %c0_31] : memref<36x256xf32, #tpu.memory_space<vmem>>, vector<36x256xf32>
    %cst = arith.constant dense<0.000000e+00> : vector<8x256xf32>
    %72 = tpu.matmul %70, %71, %cst {dimension_numbers = #tpu.dot_dimension_numbers<[1], [0], [0], [1], [0, 0, 1, 1], [], []>} : vector<8x36xf32>, vector<36x256xf32>, vector<8x256xf32> -> vector<8x256xf32>
    %73 = vector.broadcast %26 : vector<8x1xf32> to vector<8x256xf32>
    %74 = arith.addf %72, %73 : vector<8x256xf32>
    %cst_32 = arith.constant 0.000000e+00 : f32
    %75 = vector.broadcast %cst_32 : f32 to vector<8x256xf32>
    %76 = arith.cmpf ogt, %74, %75 : vector<8x256xf32>
    %77 = vector.broadcast %25 : f32 to vector<8x256xf32>
    %78 = arith.mulf %77, %74 : vector<8x256xf32>
    %79 = arith.select %76, %74, %78 : vector<8x256xi1>, vector<8x256xf32>
    %c0_33 = arith.constant 0 : index
    %c0_34 = arith.constant 0 : index
    %c0_35 = arith.constant 0 : index
    %80 = vector.load %arg5[%c0_33, %c0_34, %c0_35] : memref<1x8x256xf32, #tpu.memory_space<vmem>>, vector<1x8x256xf32>
    %81 = vector.shape_cast %80 : vector<1x8x256xf32> to vector<8x256xf32>
    %82 = vector.shape_cast %79 : vector<8x256xf32> to vector<1x8x256xf32>
    tpu.vector_store %arg5[%c0_33, %c0_34, %c0_35], %82 {strides = array<i32>} : memref<1x8x256xf32, #tpu.memory_space<vmem>>, vector<1x8x256xf32>,
    return
  }
  func.func @transform_0(%arg0: i32) -> (i32, i32, i32) {
    %c0_i32 = arith.constant 0 : i32
    %c0_i32_0 = arith.constant 0 : i32
    %c0_i32_1 = arith.constant 0 : i32
    return %arg0, %c0_i32, %c0_i32_0 : i32, i32, i32
  }
  func.func @transform_1(%arg0: i32) -> (i32, i32) {
    %c0_i32 = arith.constant 0 : i32
    %c0_i32_0 = arith.constant 0 : i32
    %c0_i32_1 = arith.constant 0 : i32
    return %c0_i32, %c0_i32_0 : i32, i32
  }
  func.func @transform_2(%arg0: i32) -> (i32, i32) {
    %c0_i32 = arith.constant 0 : i32
    %c0_i32_0 = arith.constant 0 : i32
    %c0_i32_1 = arith.constant 0 : i32
    return %c0_i32, %c0_i32_0 : i32, i32
  }
  func.func @transform_3(%arg0: i32) -> (i32, i32) {
    %c0_i32 = arith.constant 0 : i32
    %c0_i32_0 = arith.constant 0 : i32
    %c0_i32_1 = arith.constant 0 : i32
    return %c0_i32, %c0_i32_0 : i32, i32
  }
  func.func @transform_4(%arg0: i32) -> (i32, i32, i32) {
    %c0_i32 = arith.constant 0 : i32
    %c0_i32_0 = arith.constant 0 : i32
    %c0_i32_1 = arith.constant 0 : i32
    return %arg0, %c0_i32, %c0_i32_0 : i32, i32, i32
  }
}

</mosaic_0001>

<llo_original>
// kernel: tpu_custom_call.1
$region0: #{tpu_custom_call.1}
  #allocation0 [shape = 'u32[]', space=smem, size = 0x4, offset = 0x4, fixed_abs, tag = 'smem constant byte address 0x4 - core index']
  #allocation1 [shape = 'u32[72,128]{1,0:T(1,128)}', space=vmem, size = 0x9000, scoped, tag = 'internal scratch']
  #allocation2 [shape = 'f32[36,256]{1,0:T(8,128)}', space=vmem, size = 0xa000, scoped, tag = 'scratch operand']
  #allocation3 [shape = 'f32[1,1]{1,0:T(1,128)S(6)}', space=smem, size = 0x200, scoped, tag = 'scoped memory for tpu_custom_call.1']
  %s0 = inlined_call_operand.hbm [shape: f32[2,4,256], index: 0, kind: input, shape index: {}]
  %s1 = inlined_call_operand.vmem [shape: f32[8,36], index: 1, kind: input, shape index: {}]
  %s2 = inlined_call_operand.vmem [shape: f32[8,1], index: 2, kind: input, shape index: {}]
  %s3 = inlined_call_operand.<no memory space> [shape: f32[1,1], index: 3, kind: input, shape index: {}]
  %s4 = inlined_call_operand.hbm [shape: f32[2,8,256], index: 4, kind: output, shape index: {}]
  %s5 = sld [smem:[#allocation0]]
  $region53: #{tpu_custom_call.1} parent=0
    _
  %s7 = ssub.s32 1, %s5
  %s8 = scalar_select 0, %s7, %s5
  %9 = sst [smem:[#allocation3]] %s3
  $region1: #{tpu_custom_call.1} parent=0
    #allocation4 [shape = 'u8[8192]{0}', space=vmem, size = 0x2000, scoped, tag = 'input window, operand 0']
    #allocation5 [shape = 's32[2]{0}', space=sflag, size = 0x8, scoped, tag = 'scoped memory for tpu_custom_call.1']
    #allocation6 [shape = 's32[2]{0}', space=sflag, size = 0x8, scoped, tag = 'scoped memory for tpu_custom_call.1']
    #allocation7 [shape = 'u8[16384]{0}', space=vmem, size = 0x4000, scoped, tag = 'output window, operand 0']
    %10 = vsyncpa [#allocation5], 0
    %s11 = scalar_lea.sflag [#allocation5], 1
    %12 = vsyncpa %s11, 0
    %13 = vsyncpa [#allocation6], 0
    %s14 = scalar_lea.sflag [#allocation6], 1
    %15 = vsyncpa %s14, 0
    loop: start=0, step=1, limit=4
    $region2: #{tpu_custom_call.1} parent=1 // loop_pre_header
      _
    $region3: #{tpu_custom_call.1} parent=1 // loop_header
      %s17 = sphi 0, %s21
      %p18 = scmp.ge.s32.totalorder %s17, 4
      %s27 = sphi 0, %s29
      %s30 = sphi 0, %s27
      %s31 = sphi 0, %s30
      %s47 = sphi 0, %s31
      %s51 = sphi 0, %s51
      %s53 = sphi 0, %s51
      %s54 = sphi 0, %s53
      %s68 = sphi 0, %s54
      %s72 = sphi 0, %s72
      %s74 = sphi 0, %s72
      %s75 = sphi 0, %s74
      %s89 = sphi 0, %s75
      %s93 = sphi 0, %s93
      %s95 = sphi 0, %s93
      %s96 = sphi 0, %s95
      %s110 = sphi 0, %s96
      %s116 = sphi 0, %s118
      %s119 = sphi 0, %s116
      %s120 = sphi 0, %s119
      %s136 = sphi 0, %s120
    $region4: #{tpu_custom_call.1} parent=1 // loop_header_branch
      %20 = sbr.rel (%p18) target = $region8
    $region5: #{tpu_custom_call.1} parent=1 // loop_body
      %s22 = ssub.s32 %s17, 1
      %s23 = ssub.s32 %s17, 2
      %s24 = sadd.s32 %s17, 1
      %s25 = ssub.s32 %s17, %s24
      %p26 = scmp.eq.s32.totalorder %s25, 0
      %s28 = sadd.s32 %s27, 1
      %s29 = scalar_select %p26, %s27, %s28
      %p32 = pneg %p26
      %p33 = scmp.eq.s32.totalorder %s17, 1
      %p34 = por %p32, %p33
      %p35 = scmp.ne.s32.totalorder %s27, %s30
      %p36 = scmp.eq.s32.totalorder %s17, 0
      %p37 = por %p35, %p36
      %p38 = scmp.ne.s32.totalorder %s27, %s30
      %p39 = scmp.eq.s32.totalorder %s22, 1
      %p40 = por %p38, %p39
      %p41 = scmp.ne.s32.totalorder %s30, %s31
      %p42 = scmp.eq.s32.totalorder %s22, 0
      %p43 = por %p41, %p42
      %p44 = scmp.ne.s32.totalorder %s30, %s31
      %p45 = scmp.eq.s32.totalorder %s23, 1
      %p46 = por %p44, %p45
      %p48 = scmp.ne.s32.totalorder %s31, %s47
      %p49 = scmp.eq.s32.totalorder %s23, 0
      %p50 = por %p48, %p49
      %s52 = sadd.s32 %s51, 1
      %p55 = scmp.eq.s32.totalorder %s17, 1
      %p56 = scmp.ne.s32.totalorder %s51, %s53
      %p57 = scmp.eq.s32.totalorder %s17, 0
      %p58 = por %p56, %p57
      %p59 = scmp.ne.s32.totalorder %s51, %s53
      %p60 = scmp.eq.s32.totalorder %s22, 1
      %p61 = por %p59, %p60
      %p62 = scmp.ne.s32.totalorder %s53, %s54
      %p63 = scmp.eq.s32.totalorder %s22, 0
      %p64 = por %p62, %p63
      %p65 = scmp.ne.s32.totalorder %s53, %s54
      %p66 = scmp.eq.s32.totalorder %s23, 1
      %p67 = por %p65, %p66
      %p69 = scmp.ne.s32.totalorder %s54, %s68
      %p70 = scmp.eq.s32.totalorder %s23, 0
      %p71 = por %p69, %p70
      %s73 = sadd.s32 %s72, 1
      %p76 = scmp.eq.s32.totalorder %s17, 1
      %p77 = scmp.ne.s32.totalorder %s72, %s74
      %p78 = scmp.eq.s32.totalorder %s17, 0
      %p79 = por %p77, %p78
      %p80 = scmp.ne.s32.totalorder %s72, %s74
      %p81 = scmp.eq.s32.totalorder %s22, 1
      %p82 = por %p80, %p81
      %p83 = scmp.ne.s32.totalorder %s74, %s75
      %p84 = scmp.eq.s32.totalorder %s22, 0
      %p85 = por %p83, %p84
      %p86 = scmp.ne.s32.totalorder %s74, %s75
      %p87 = scmp.eq.s32.totalorder %s23, 1
      %p88 = por %p86, %p87
      %p90 = scmp.ne.s32.totalorder %s75, %s89
      %p91 = scmp.eq.s32.totalorder %s23, 0
      %p92 = por %p90, %p91
      %s94 = sadd.s32 %s93, 1
      %p97 = scmp.eq.s32.totalorder %s17, 1
      %p98 = scmp.ne.s32.totalorder %s93, %s95
      %p99 = scmp.eq.s32.totalorder %s17, 0
      %p100 = por %p98, %p99
      %p101 = scmp.ne.s32.totalorder %s93, %s95
      %p102 = scmp.eq.s32.totalorder %s22, 1
      %p103 = por %p101, %p102
      %p104 = scmp.ne.s32.totalorder %s95, %s96
      %p105 = scmp.eq.s32.totalorder %s22, 0
      %p106 = por %p104, %p105
      %p107 = scmp.ne.s32.totalorder %s95, %s96
      %p108 = scmp.eq.s32.totalorder %s23, 1
      %p109 = por %p107, %p108
      %p111 = scmp.ne.s32.totalorder %s96, %s110
      %p112 = scmp.eq.s32.totalorder %s23, 0
      %p113 = por %p111, %p112
      %s114 = ssub.s32 %s17, %s24
      %p115 = scmp.eq.s32.totalorder %s114, 0
      %s117 = sadd.s32 %s116, 1
      %s118 = scalar_select %p115, %s116, %s117
      %p121 = pneg %p115
      %p122 = scmp.eq.s32.totalorder %s17, 1
      %p123 = por %p121, %p122
      %p124 = scmp.ne.s32.totalorder %s116, %s119
      %p125 = scmp.eq.s32.totalorder %s17, 0
      %p126 = por %p124, %p125
      %p127 = scmp.ne.s32.totalorder %s116, %s119
      %p128 = scmp.eq.s32.totalorder %s22, 1
      %p129 = por %p127, %p128
      %p130 = scmp.ne.s32.totalorder %s119, %s120
      %p131 = scmp.eq.s32.totalorder %s22, 0
      %p132 = por %p130, %p131
      %p133 = scmp.ne.s32.totalorder %s119, %s120
      %p134 = scmp.eq.s32.totalorder %s23, 1
      %p135 = por %p133, %p134
      %p137 = scmp.ne.s32.totalorder %s120, %s136
      %p138 = scmp.eq.s32.totalorder %s23, 0
      %p139 = por %p137, %p138
      %p140 = scmp.le.s32.totalorder 1, %s17
      %p141 = scmp.lt.s32.totalorder %s17, 3
      %p142 = pnand %p140, %p141
      %p143 = pneg %p142
      // Predicated region
      $region9: #{tpu_custom_call.1} parent=5 // pred_check
        _
      $region10: #{tpu_custom_call.1} parent=5 // pred_check_branch
        %145 = sbr.rel (%p142) target = $region12
      $region11: #{tpu_custom_call.1} parent=5 // pred_region
        %s146 = ssub.s32 %s17, 1
        // Predicated region
        $region13: #{tpu_custom_call.1} parent=11 // pred_check
          %p147 = pneg %p64
        $region14: #{tpu_custom_call.1} parent=11 // pred_check_branch
          %149 = sbr.rel (%p147) target = $region16
        $region15: #{tpu_custom_call.1} parent=11 // pred_region
          _
        $region16: #{tpu_custom_call.1} parent=11 // pred_fallthru
          _
        // Predicated region
        $region17: #{tpu_custom_call.1} parent=11 // pred_check
          %p150 = pneg %p85
        $region18: #{tpu_custom_call.1} parent=11 // pred_check_branch
          %152 = sbr.rel (%p150) target = $region20
        $region19: #{tpu_custom_call.1} parent=11 // pred_region
          _
        $region20: #{tpu_custom_call.1} parent=11 // pred_fallthru
          _
        // Predicated region
        $region21: #{tpu_custom_call.1} parent=11 // pred_check
          %p153 = pneg %p106
        $region22: #{tpu_custom_call.1} parent=11 // pred_check_branch
          %155 = sbr.rel (%p153) target = $region24
        $region23: #{tpu_custom_call.1} parent=11 // pred_region
          _
        $region24: #{tpu_custom_call.1} parent=11 // pred_fallthru
          _
      $region12: #{tpu_custom_call.1} parent=5 // pred_fallthru
        _
      %p156 = scmp.lt.s32.totalorder %s17, 2
      // Predicated region
      $region25: #{tpu_custom_call.1} parent=5 // pred_check
        %p157 = pneg %p156
      $region26: #{tpu_custom_call.1} parent=5 // pred_check_branch
        %159 = sbr.rel (%p157) target = $region28
      $region27: #{tpu_custom_call.1} parent=5 // pred_region
        // Predicated region
        $region29: #{tpu_custom_call.1} parent=27 // pred_check
          %p160 = pneg %p37
        $region30: #{tpu_custom_call.1} parent=27 // pred_check_branch
          %162 = sbr.rel (%p160) target = $region32
        $region31: #{tpu_custom_call.1} parent=27 // pred_region
          %s163 = sand.u32 %s27, 1
          %s164 = scalar_lea.sflag [#allocation5], %s163
          %s165 = sand.u32 %s27, 1
          %s166 = smul.addr %s165, 8
          %s167 = scalar_lea.vmem [#allocation4], %s166
          %169 = vsyncadd %s164, 0
          %s170 = smul.addr %s17, 2
          %s171 = smul.addr %s170, 4
          %s172 = scalar_lea.hbm %s0, %s171
          %s174 = sshll.u32 %s172, 4
          %s175 = int_to_ptr.hbm [resolvable:$true] %s174
          %s176 = sshll.u32 %s167, 4
          %s177 = int_to_ptr.vmem [resolvable:$true] %s176
          %179 = dma.hbm_to_vmem [thread:$0]  %s175, 128, %s177, %s164
        $region32: #{tpu_custom_call.1} parent=27 // pred_fallthru
          _
      $region28: #{tpu_custom_call.1} parent=5 // pred_fallthru
        _
      %p180 = scmp.le.s32.totalorder 1, %s17
      %p181 = scmp.lt.s32.totalorder %s17, 3
      %p182 = pnand %p180, %p181
      %p183 = pneg %p182
      // Predicated region
      $region33: #{tpu_custom_call.1} parent=5 // pred_check
        _
      $region34: #{tpu_custom_call.1} parent=5 // pred_check_branch
        %185 = sbr.rel (%p182) target = $region36
      $region35: #{tpu_custom_call.1} parent=5 // pred_region
        %s186 = ssub.s32 %s17, 1
        %s187 = sand.u32 %s30, 1
        %s188 = scalar_lea.sflag [#allocation5], %s187
        %s189 = sand.u32 %s30, 1
        %s190 = smul.addr %s189, 8
        %s191 = scalar_lea.vmem [#allocation4], %s190
        // Predicated region
        $region37: #{tpu_custom_call.1} parent=35 // pred_check
          %p192 = pneg %p43
        $region38: #{tpu_custom_call.1} parent=35 // pred_check_branch
          %194 = sbr.rel (%p192) target = $region40
        $region39: #{tpu_custom_call.1} parent=35 // pred_region
          %196 = dma.done %s188, 128
        $region40: #{tpu_custom_call.1} parent=35 // pred_fallthru
          _
        %s197 = sand.u32 %s30, 1
        %s198 = scalar_lea.sflag [#allocation5], %s197
        %s199 = sand.u32 %s30, 1
        %s200 = smul.addr %s199, 8
        %s201 = scalar_lea.vmem [#allocation4], %s200
        %p202 = pneg %p43
        %p203 = pneg %p40
        %p204 = pneg %p64
        %p205 = pneg %p61
        %p206 = pneg %p85
        %p207 = pneg %p82
        %p208 = pneg %p106
        %p209 = pneg %p103
        %p210 = pneg %p132
        %p211 = pneg %p129
        %s212 = sand.u32 %s119, 1
        %s213 = scalar_lea.sflag [#allocation6], %s212
        %s214 = sand.u32 %s119, 1
        %s215 = smul.addr %s214, 16
        %s216 = scalar_lea.vmem [#allocation7], %s215
        %v217 = vlaneseq
        %v218 = vand.u32 %v217, 127
        %v219 = vadd.s32 %v218, 128
        %vm220 = vcmp.lt.s32.totalorder %v218, 0
        %v221 = vsub.s32 0, %v218
        %v222 = vsel %vm220, %v221, %v218
        %v223 = vshrl.u32 %v222, 4
        %v224 = vand.u32 %v222, 15
        %v225 = vsub.s32 0, %v224
        %v226 = vsel %vm220, %v225, %v224
        %vm227 = vcmp.lt.s32.totalorder %v219, 0
        %v228 = vsub.s32 0, %v219
        %v229 = vsel %vm227, %v228, %v219
        %v230 = vshrl.u32 %v229, 4
        %v231 = vand.u32 %v229, 15
        %v232 = vsub.s32 0, %v231
        %v233 = vsel %vm227, %v232, %v231
        %vm234 = vcmp.ne.s32.totalorder %v226, 0
        %vm235 = vcmp.ne.s32.totalorder %v233, 0
        %vm236 = vcmp.lt.s32.totalorder %v226, 0
        %vm237 = vcmp.lt.s32.totalorder %v233, 0
        %vm238 = vmand %vm236, %vm234
        %vm239 = vmand %vm237, %vm235
        %v240 = vadd.s32 %v226, 16
        %v241 = vadd.s32 %v233, 16
        %v242 = vsel %vm238, %v240, %v226
        %v243 = vsel %vm239, %v241, %v233
        %vm244 = vcmp.eq.s32.totalorder %v242, 0
        %vm245 = vcmp.eq.s32.totalorder %v243, 0
        %vm246 = vcmp.eq.s32.totalorder %v242, 15
        %vm247 = vcmp.eq.s32.totalorder %v243, 15
        %vm248 = vcmp.lt.s32.totalorder %v218, 16
        %vm249 = vcmp.lt.s32.totalorder %v219, 16
        %vm250 = vcmp.ge.s32.totalorder %v218, 240
        %vm251 = vcmp.ge.s32.totalorder %v219, 240
        %s252 = sld [smem:[#allocation3]]
        %v253 = vld [vmem:[%s2] sm:$0xff]
        %v254 = vld [vmem:[%s191] sm:$0xff]
        %256 = vst [vmem:[#allocation1] ss:$2 sm:$0xff] %v254
        %v257 = vld.sshfl [vmem:[#allocation1] sm:$0xff pattern:$0x75316420]
        %v258 = vld.sshfl [vmem:[#allocation1 + $0x8] sm:$0xff pattern:$0x75316420]
        %261 = vrot.lane.b32.xlu0 %v257, 127
        %v262 = vpop.permute.xlu0 %261
        %263 = vrot.lane.b32.xlu0 %v258, 127
        %v264 = vpop.permute.xlu0 %263
        %vm265 = vcmp.lt.s32.totalorder %v218, 127
        %v266 = vsel %vm265, %v262, %v264
        %v267 = vsel %vm265, %v264, %v262
        %268 = vst [vmem:[#allocation1] ss:$2 sm:$0xff] %v254
        %v269 = vld.sshfl [vmem:[#allocation1] sm:$0xff pattern:$0x75316420]
        %v270 = vld.sshfl [vmem:[#allocation1 + $0x8] sm:$0xff pattern:$0x75316420]
        %273 = vrot.lane.b32.xlu0 %v269, 1
        %v274 = vpop.permute.xlu0 %273
        %275 = vrot.lane.b32.xlu0 %v270, 1
        %v276 = vpop.permute.xlu0 %275
        %vm277 = vcmp.lt.s32.totalorder %v218, 1
        %v278 = vsel %vm277, %v274, %v276
        %v279 = vsel %vm277, %v276, %v274
        %v280 = vsel %vm244, 1, 0
        %v281 = vsel %vm245, 1, 0
        %vm282 = vcmp.eq.s32.totalorder %v280, 1
        %vm283 = vcmp.eq.s32.totalorder %v281, 1
        %v284 = vsel %vm282, %v266, %v279
        %v285 = vsel %vm283, %v267, %v278
        %v286 = vsel %vm246, 1, 0
        %v287 = vsel %vm247, 1, 0
        %vm288 = vcmp.eq.s32.totalorder %v286, 1
        %vm289 = vcmp.eq.s32.totalorder %v287, 1
        %v290 = vsel %vm288, %v279, %v266
        %v291 = vsel %vm289, %v278, %v267
        %292 = vrot.lane.b32.xlu0 %v284, 112
        %v293 = vpop.permute.xlu0 %292
        %294 = vrot.lane.b32.xlu0 %v285, 112
        %v295 = vpop.permute.xlu0 %294
        %vm296 = vcmp.lt.s32.totalorder %v218, 112
        %v297 = vsel %vm296, %v293, %v295
        %v298 = vsel %vm296, %v295, %v293
        %299 = vrot.lane.b32.xlu0 %v284, 16
        %v300 = vpop.permute.xlu0 %299
        %301 = vrot.lane.b32.xlu0 %v285, 16
        %v302 = vpop.permute.xlu0 %301
        %v303 = vsel %vm248, %v300, %v302
        %v304 = vsel %vm248, %v302, %v300
        %v305 = vsel %vm248, 1, 0
        %v306 = vsel %vm249, 1, 0
        %vm307 = vcmp.eq.s32.totalorder %v305, 1
        %vm308 = vcmp.eq.s32.totalorder %v306, 1
        %v309 = vsel %vm307, %v297, %v304
        %v310 = vsel %vm308, %v298, %v303
        %v311 = vsel %vm250, 1, 0
        %v312 = vsel %vm251, 1, 0
        %vm313 = vcmp.eq.s32.totalorder %v311, 1
        %vm314 = vcmp.eq.s32.totalorder %v312, 1
        %v315 = vsel %vm313, %v304, %v297
        %v316 = vsel %vm314, %v303, %v298
        %317 = vst [vmem:[#allocation2] sm:$0xf] %v309
        %318 = vst [vmem:[#allocation2 + $0x8] sm:$0xf] %v310
        %v321 = vrot.slane %v284, 4
        %v322 = vrot.slane %v285, 4
        %325 = vst [vmem:[#allocation2 + $0x10] sm:$0xf0] %v321
        %326 = vst [vmem:[#allocation2 + $0x18] sm:$0xf0] %v322
        %327 = vst [vmem:[#allocation2 + $0x30] sm:$0xf] %v315
        %328 = vst [vmem:[#allocation2 + $0x38] sm:$0xf] %v316
        %329 = vst [vmem:[#allocation1] ss:$2 sm:$0xff] %v254
        %v330 = vld.sshfl [vmem:[#allocation1] sm:$0xff pattern:$0x75316420]
        %v331 = vld.sshfl [vmem:[#allocation1 + $0x8] sm:$0xff pattern:$0x75316420]
        %334 = vrot.lane.b32.xlu0 %v330, 112
        %v335 = vpop.permute.xlu0 %334
        %336 = vrot.lane.b32.xlu0 %v331, 112
        %v337 = vpop.permute.xlu0 %336
        %v338 = vsel %vm296, %v335, %v337
        %v339 = vsel %vm296, %v337, %v335
        %340 = vst [vmem:[#allocation1] ss:$2 sm:$0xff] %v254
        %v341 = vld.sshfl [vmem:[#allocation1] sm:$0xff pattern:$0x75316420]
        %v342 = vld.sshfl [vmem:[#allocation1 + $0x8] sm:$0xff pattern:$0x75316420]
        %345 = vrot.lane.b32.xlu0 %v341, 16
        %v346 = vpop.permute.xlu0 %345
        %347 = vrot.lane.b32.xlu0 %v342, 16
        %v348 = vpop.permute.xlu0 %347
        %v349 = vsel %vm248, %v346, %v348
        %v350 = vsel %vm248, %v348, %v346
        %v351 = vsel %vm307, %v338, %v350
        %v352 = vsel %vm308, %v339, %v349
        %v353 = vsel %vm313, %v350, %v338
        %v354 = vsel %vm314, %v349, %v339
        %v357 = vrot.slane %v351, 4
        %v358 = vrot.slane %v352, 4
        %361 = vst [vmem:[#allocation2] sm:$0xf0] %v357
        %362 = vst [vmem:[#allocation2 + $0x8] sm:$0xf0] %v358
        %363 = vst [vmem:[#allocation1] ss:$2 sm:$0xff] %v254
        %v364 = vld.sshfl [vmem:[#allocation1] sm:$0xff pattern:$0x75316420]
        %v365 = vld.sshfl [vmem:[#allocation1 + $0x8] sm:$0xff pattern:$0x75316420]
        %368 = vst [vmem:[#allocation2 + $0x20] sm:$0xf] %v364
        %369 = vst [vmem:[#allocation2 + $0x28] sm:$0xf] %v365
        %v372 = vrot.slane %v353, 4
        %v373 = vrot.slane %v354, 4
        %376 = vst [vmem:[#allocation2 + $0x30] sm:$0xf0] %v372
        %377 = vst [vmem:[#allocation2 + $0x38] sm:$0xf0] %v373
        %378 = vrot.lane.b32.xlu0 %v290, 112
        %v379 = vpop.permute.xlu0 %378
        %380 = vrot.lane.b32.xlu0 %v291, 112
        %v381 = vpop.permute.xlu0 %380
        %v382 = vsel %vm296, %v379, %v381
        %v383 = vsel %vm296, %v381, %v379
        %384 = vrot.lane.b32.xlu0 %v290, 16
        %v385 = vpop.permute.xlu0 %384
        %386 = vrot.lane.b32.xlu0 %v291, 16
        %v387 = vpop.permute.xlu0 %386
        %v388 = vsel %vm248, %v385, %v387
        %v389 = vsel %vm248, %v387, %v385
        %v390 = vsel %vm307, %v382, %v389
        %v391 = vsel %vm308, %v383, %v388
        %v392 = vsel %vm313, %v389, %v382
        %v393 = vsel %vm314, %v388, %v383
        %394 = vst [vmem:[#allocation2 + $0x10] sm:$0xf] %v390
        %395 = vst [vmem:[#allocation2 + $0x18] sm:$0xf] %v391
        %v398 = vrot.slane %v290, 4
        %v399 = vrot.slane %v291, 4
        %402 = vst [vmem:[#allocation2 + $0x20] sm:$0xf0] %v398
        %403 = vst [vmem:[#allocation2 + $0x28] sm:$0xf0] %v399
        %404 = vst [vmem:[#allocation2 + $0x40] sm:$0xf] %v392
        %405 = vst [vmem:[#allocation2 + $0x48] sm:$0xf] %v393
        %v406 = vld [vmem:[%s1] sm:$0xff]
        %v407 = vld [vmem:[#allocation2] sm:$0xff]
        %v408 = vld [vmem:[#allocation2 + $0x8] sm:$0xff]
        %v409 = vld [vmem:[#allocation2 + $0x10] sm:$0xff]
        %v410 = vld [vmem:[#allocation2 + $0x18] sm:$0xff]
        %v411 = vld [vmem:[#allocation2 + $0x20] sm:$0xff]
        %v412 = vld [vmem:[#allocation2 + $0x28] sm:$0xff]
        %v413 = vld [vmem:[#allocation2 + $0x30] sm:$0xff]
        %v414 = vld [vmem:[#allocation2 + $0x38] sm:$0xff]
        %v415 = vld [vmem:[#allocation2 + $0x40] sm:$0xf]
        %v416 = vld [vmem:[#allocation2 + $0x48] sm:$0xf]
        %418 = vset.pattern.permute.xlu0 0
        %419 = vperm.xlu0 %418, %v253
        %v420 = vpop.permute.xlu0 %419
        %vm422 = vcmask 293888
        %v424 = vsel %vm422, %v406, 0
        %vm426 = vcmask 1043456
        %v428 = vsel %vm426, %v415, 0
        %v431 = vsel %vm426, %v416, 0
        %433 = vmatpush.msra.mxu0 0.0
        %434 = vmatpush.msra.mxu0 0.0
        %435 = vmatpush.msra.mxu0 0.0
        %436 = vmatpush.msra.mxu0 0.0
        %437 = vmatpush.msra.mxu0 0.0
        %438 = vmatpush.msra.mxu0 0.0
        %439 = vmatpush.msra.mxu0 0.0
        %440 = vmatpush.msra.mxu0 0.0
        %441 = vmatpush.msra.mxu0 0.0
        %442 = vmatpush.msra.mxu0 0.0
        %443 = vmatpush.msra.mxu0 0.0
        %444 = vmatpush.msra.mxu0 %v428
        %445 = vmatpush.msra.mxu0 %v413
        %446 = vmatpush.msra.mxu0 %v411
        %447 = vmatpush.msra.mxu0 %v409
        %448 = vmatpush.msra.mxu0 %v407
        %449 = vmatmul.f32.gmra.mxu0 %v424
        %v450 = vpop.f32.mrf.mxu0
        %v451 = vadd.f32 %v420, %v450
        %452 = vdwg.mxu0
        %453 = vmatpush.msra.mxu0 0.0
        %454 = vmatpush.msra.mxu0 0.0
        %455 = vmatpush.msra.mxu0 0.0
        %456 = vmatpush.msra.mxu0 0.0
        %457 = vmatpush.msra.mxu0 0.0
        %458 = vmatpush.msra.mxu0 0.0
        %459 = vmatpush.msra.mxu0 0.0
        %460 = vmatpush.msra.mxu0 0.0
        %461 = vmatpush.msra.mxu0 0.0
        %462 = vmatpush.msra.mxu0 0.0
        %463 = vmatpush.msra.mxu0 0.0
        %464 = vmatpush.msra.mxu0 %v431
        %465 = vmatpush.msra.mxu0 %v414
        %466 = vmatpush.msra.mxu0 %v412
        %467 = vmatpush.msra.mxu0 %v410
        %468 = vmatpush.msra.mxu0 %v408
        %469 = vmatmul.f32.gmra.mxu0 %v424
        %v470 = vpop.f32.mrf.mxu0
        %v471 = vadd.f32 %v420, %v470
        %472 = vdwg.mxu0
        %vm473 = vcmp.gt.f32.partialorder %v451, 0.0
        %vm474 = vcmp.gt.f32.partialorder %v471, 0.0
        %v475 = vstv %s252
        %v476 = vmul.f32 %v475, %v451
        %v477 = vmul.f32 %v475, %v471
        %v478 = vsel %vm473, %v451, %v476
        %v479 = vsel %vm474, %v471, %v477
        %480 = vst [vmem:[%s216] sm:$0xff] %v478
        %481 = vst [vmem:[%s216 + $0x8] sm:$0xff] %v479
        %s482 = sand.u32 %s119, 1
        %s483 = scalar_lea.sflag [#allocation6], %s482
        %s484 = sand.u32 %s119, 1
        %s485 = smul.addr %s484, 16
        %s486 = scalar_lea.vmem [#allocation7], %s485
        // Predicated region
        $region41: #{tpu_custom_call.1} parent=35 // pred_check
          %p487 = pneg %p129
        $region42: #{tpu_custom_call.1} parent=35 // pred_check_branch
          %489 = sbr.rel (%p487) target = $region44
        $region43: #{tpu_custom_call.1} parent=35 // pred_region
          %491 = vsyncadd %s483, 0
          %s492 = smul.addr %s22, 2
          %s493 = smul.addr %s492, 8
          %s494 = scalar_lea.hbm %s4, %s493
          %s496 = sshll.u32 %s486, 4
          %s497 = int_to_ptr.vmem [resolvable:$true] %s496
          %s498 = sshll.u32 %s494, 4
          %s499 = int_to_ptr.hbm [resolvable:$true] %s498
          %501 = dma.vmem_to_hbm [thread:$0]  %s497, 256, %s499, %s483
        $region44: #{tpu_custom_call.1} parent=35 // pred_fallthru
          _
      $region36: #{tpu_custom_call.1} parent=5 // pred_fallthru
        _
      %p502 = scmp.le.s32.totalorder 2, %s17
      // Predicated region
      $region45: #{tpu_custom_call.1} parent=5 // pred_check
        %p503 = pneg %p502
      $region46: #{tpu_custom_call.1} parent=5 // pred_check_branch
        %505 = sbr.rel (%p503) target = $region48
      $region47: #{tpu_custom_call.1} parent=5 // pred_region
        %s506 = ssub.s32 %s17, 2
        // Predicated region
        $region49: #{tpu_custom_call.1} parent=47 // pred_check
          %p507 = pneg %p135
        $region50: #{tpu_custom_call.1} parent=47 // pred_check_branch
          %509 = sbr.rel (%p507) target = $region52
        $region51: #{tpu_custom_call.1} parent=47 // pred_region
          %s510 = sand.u32 %s120, 1
          %s511 = scalar_lea.sflag [#allocation6], %s510
          %s512 = sand.u32 %s120, 1
          %s513 = smul.addr %s512, 16
          %s514 = scalar_lea.vmem [#allocation7], %s513
          %516 = dma.done %s511, 256
        $region52: #{tpu_custom_call.1} parent=47 // pred_fallthru
          _
      $region48: #{tpu_custom_call.1} parent=5 // pred_fallthru
        _
    $region6: #{tpu_custom_call.1} parent=1 // loop_footer
      %s21 = sadd.s32 1, %s17
    $region7: #{tpu_custom_call.1} parent=1 // loop_footer_branch
      %16 = sbr.rel target = $region3
    $region8: #{tpu_custom_call.1} parent=1 // loop_exit
      _
    %517 = vsyncpa [#allocation5], 1
    %s518 = scalar_lea.sflag [#allocation5], 1
    %519 = vsyncpa %s518, 1
    %520 = vsyncpa [#allocation6], 1
    %s521 = scalar_lea.sflag [#allocation6], 1
    %522 = vsyncpa %s521, 1

</llo_original>
